<compile_context>
chip_gen: v5e
topology: v5e:2x2
jax: 0.10.0
libtpu: 0.0.40
codegen_flags: <defaults>
</compile_context>

<pallas_src>
import jax
import jax.numpy as jnp
from jax.experimental import pallas as pl
from jax.experimental.pallas import tpu as pltpu


def _pick_tile_bc(bc: int, per_image_bytes: int,
                  vmem_budget_bytes: int = 8 * 1024 * 1024,
                  cap: int = 512) -> int:
    """Largest divisor of bc that keeps double-buffered in+out tiles in budget."""
    # 2x for double buffering of both the input and output tiles.
    max_tile = max(1, min(cap, vmem_budget_bytes // (2 * per_image_bytes)))
    max_tile = min(max_tile, bc)
    best = 1
    for d in range(1, max_tile + 1):
        if bc % d == 0:
            best = d
    return best


def periodic_padding_2d(x: jax.Array, pad_width: int) -> jax.Array:
    """Periodic pad in W, zero pad in H. Input (B, C, H, W) -> (B, C, H+2p, W+2p)."""
    if pad_width == 0:
        return x

    B, C, H, W = x.shape
    p = pad_width
    assert p <= W, (
        f"pad_width={p} > W={W}: wrap slices would diverge from true periodic padding"
    )
    Ho, Wo = H + 2 * p, W + 2 * p

    # Collapse batch*channels into one fat axis; H, W stay as full-extent
    # trailing dims so the (8,128) block constraint is trivially satisfied.
    BC = B * C
    x_flat = x.reshape(BC, H, W)

    dtype_bytes = jnp.dtype(x.dtype).itemsize
    per_image_bytes = (H * W + Ho * Wo) * dtype_bytes
    tile_bc = _pick_tile_bc(BC, per_image_bytes)
    num_steps = BC // tile_bc

    def kernel(x_ref, o_ref):
        xt = x_ref[...]                                   # (tile_bc, H, W)
        # Zero only the top / bottom padding bands (corners included).
        zero_band = jnp.zeros((tile_bc, p, Wo), dtype=o_ref.dtype)
        o_ref[:, 0:p, :] = zero_band
        o_ref[:, p + H:p + H + p, :] = zero_band
        # Interior band: [last p cols | image | first p cols], one full-width store.
        band = jnp.concatenate([xt[:, :, W - p:W], xt, xt[:, :, 0:p]], axis=-1)
        o_ref[:, p:p + H, :] = band

    out_flat = pl.pallas_call(
        kernel,
        out_shape=jax.ShapeDtypeStruct((BC, Ho, Wo), x.dtype),
        grid=(num_steps,),
        in_specs=[pl.BlockSpec((tile_bc, H, W), lambda i: (i, 0, 0))],
        out_specs=pl.BlockSpec((tile_bc, Ho, Wo), lambda i: (i, 0, 0)),
        compiler_params=pltpu.CompilerParams(
            dimension_semantics=("parallel",),
            vmem_limit_bytes=32 * 1024 * 1024,
        ),
    )(x_flat)

    return out_flat.reshape(B, C, Ho, Wo)


def periodic_padding_2d_ref(x: jax.Array, pad_width: int) -> jax.Array:
    """Pure-JAX reference matching the PyTorch forward exactly."""
    if pad_width == 0:
        return x
    p = pad_width
    wide = jnp.concatenate([x[:, :, :, -p:], x, x[:, :, :, :p]], axis=-1)
    return jnp.pad(wide, ((0, 0), (0, 0), (p, p), (0, 0)))


if __name__ == "__main__":
    key = jax.random.PRNGKey(0)
    B, C, H, W = 2, 4, 16, 16
    pad_width = 2

    x = jax.random.normal(key, (B, C, H, W), dtype=jnp.float32)

    out = periodic_padding_2d(x, pad_width)
    out = jax.block_until_ready(out)

    ref = periodic_padding_2d_ref(x, pad_width)
    assert out.shape == (B, C, H + 2 * pad_width, W + 2 * pad_width)
    assert out.dtype == x.dtype
    assert jnp.allclose(out, ref), "Pallas output does not match reference"

    print("KERNEL_OK")
</pallas_src>

<mosaic_0001>
module attributes {stable_mosaic.version = 11 : i64} {
  func.func @kernel(%arg0: i32, %arg1: memref<8x16x16xf32, #tpu.memory_space<vmem>>, %arg2: memref<8x20x20xf32, #tpu.memory_space<vmem>>) attributes {dimension_semantics = [#tpu.dimension_semantics<parallel>], iteration_bounds = array<i64: 1>, scalar_prefetch = 0 : i64, scratch_operands = 0 : i64, tpu.core_type = #tpu.core_type<tc>, window_params = [{transform_indices = @transform_0, window_bounds = array<i64: 8, 16, 16>}, {transform_indices = @transform_1, window_bounds = array<i64: 8, 20, 20>}]} {
    %c0 = arith.constant 0 : index
    %c0_0 = arith.constant 0 : index
    %c0_1 = arith.constant 0 : index
    %0 = vector.load %arg1[%c0, %c0_0, %c0_1] : memref<8x16x16xf32, #tpu.memory_space<vmem>>, vector<8x16x16xf32>
    %cst = arith.constant 0.000000e+00 : f32
    %1 = vector.broadcast %cst : f32 to vector<8x2x20xf32>
    %c0_2 = arith.constant 0 : index
    %c0_3 = arith.constant 0 : index
    %c0_4 = arith.constant 0 : index
    %2 = vector.load %arg2[%c0_2, %c0_3, %c0_4] : memref<8x20x20xf32, #tpu.memory_space<vmem>>, vector<8x2x20xf32>
    tpu.vector_store %arg2[%c0_2, %c0_3, %c0_4], %1 {strides = array<i32>} : memref<8x20x20xf32, #tpu.memory_space<vmem>>, vector<8x2x20xf32>,
    %c0_5 = arith.constant 0 : index
    %c18 = arith.constant 18 : index
    %c0_6 = arith.constant 0 : index
    %3 = vector.load %arg2[%c0_5, %c18, %c0_6] : memref<8x20x20xf32, #tpu.memory_space<vmem>>, vector<8x2x20xf32>
    tpu.vector_store %arg2[%c0_5, %c18, %c0_6], %1 {strides = array<i32>} : memref<8x20x20xf32, #tpu.memory_space<vmem>>, vector<8x2x20xf32>,
    %4 = vector.extract_strided_slice %0 {offsets = [0, 0, 14], sizes = [8, 16, 2], strides = [1, 1, 1]} : vector<8x16x16xf32> to vector<8x16x2xf32>
    %5 = vector.extract_strided_slice %0 {offsets = [0, 0, 0], sizes = [8, 16, 2], strides = [1, 1, 1]} : vector<8x16x16xf32> to vector<8x16x2xf32>
    %6 = tpu.concatenate %4, %0, %5 in 2 : vector<8x16x2xf32>, vector<8x16x16xf32>, vector<8x16x2xf32> -> vector<8x16x20xf32>
    %c0_7 = arith.constant 0 : index
    %c2 = arith.constant 2 : index
    %c0_8 = arith.constant 0 : index
    %7 = vector.load %arg2[%c0_7, %c2, %c0_8] : memref<8x20x20xf32, #tpu.memory_space<vmem>>, vector<8x16x20xf32>
    tpu.vector_store %arg2[%c0_7, %c2, %c0_8], %6 {strides = array<i32>} : memref<8x20x20xf32, #tpu.memory_space<vmem>>, vector<8x16x20xf32>,
    return
  }
  func.func @transform_0(%arg0: i32) -> (i32, i32, i32) {
    %c0_i32 = arith.constant 0 : i32
    %c0_i32_0 = arith.constant 0 : i32
    %c0_i32_1 = arith.constant 0 : i32
    return %arg0, %c0_i32, %c0_i32_0 : i32, i32, i32
  }
  func.func @transform_1(%arg0: i32) -> (i32, i32, i32) {
    %c0_i32 = arith.constant 0 : i32
    %c0_i32_0 = arith.constant 0 : i32
    %c0_i32_1 = arith.constant 0 : i32
    return %arg0, %c0_i32, %c0_i32_0 : i32, i32, i32
  }
}

</mosaic_0001>

<llo_original>
// kernel: tpu_custom_call.1
$region0: #{tpu_custom_call.1}
  #allocation0 [shape = 'u32[]', space=smem, size = 0x4, offset = 0x4, fixed_abs, tag = 'smem constant byte address 0x4 - core index']
  #allocation1 [shape = 'u32[72,128]{1,0:T(1,128)}', space=vmem, size = 0x9000, scoped, tag = 'internal scratch']
  %s0 = inlined_call_operand.hbm [shape: f32[8,16,16], index: 0, kind: input, shape index: {}]
  %s1 = inlined_call_operand.vmem [shape: f32[8,20,20], index: 1, kind: output, shape index: {}]
  %s2 = sld [smem:[#allocation0]]
  $region18: #{tpu_custom_call.1} parent=0
    _
  %s4 = ssub.s32 1, %s2
  %s5 = scalar_select 0, %s4, %s2
  $region1: #{tpu_custom_call.1} parent=0
    #allocation2 [shape = 'u8[65536]{0}', space=vmem, size = 0x10000, scoped, tag = 'input window, operand 0, single buffered']
    #allocation3 [shape = 's32[1]{0}', space=sflag, size = 0x4, scoped, tag = 'scoped memory for tpu_custom_call.1']
    %6 = vsyncpa [#allocation3], 0
    // Predicated region
    $region2: #{tpu_custom_call.1} parent=1 // pred_check
      _
    $region3: #{tpu_custom_call.1} parent=1 // pred_check_branch
      %8 = sbr.rel (0) target = $region5
    $region4: #{tpu_custom_call.1} parent=1 // pred_region
      %10 = vsyncadd [#allocation3], 0
      %s11 = sshll.u32 %s0, 4
      %s12 = int_to_ptr.hbm [resolvable:$true] %s11
      %s13 = sshll.u32 [#allocation2], 4
      %s14 = int_to_ptr.vmem [resolvable:$true] %s13
      %19 = dma.hbm_to_vmem [thread:$0]  %s12, 2048, %s14, [#allocation3], 128, 128, 8
    $region5: #{tpu_custom_call.1} parent=1 // pred_fallthru
      _
    // Predicated region
    $region6: #{tpu_custom_call.1} parent=1 // pred_check
      _
    $region7: #{tpu_custom_call.1} parent=1 // pred_check_branch
      %21 = sbr.rel (0) target = $region9
    $region8: #{tpu_custom_call.1} parent=1 // pred_region
      %23 = dma.done [#allocation3], 2048
    $region9: #{tpu_custom_call.1} parent=1 // pred_fallthru
      _
    %v24 = vld [vmem:[#allocation2] sm:$0xff]
    %v25 = vld [vmem:[#allocation2 + $0x8] sm:$0xff]
    %v26 = vld [vmem:[#allocation2 + $0x10] sm:$0xff]
    %v27 = vld [vmem:[#allocation2 + $0x18] sm:$0xff]
    %v28 = vld [vmem:[#allocation2 + $0x20] sm:$0xff]
    %v29 = vld [vmem:[#allocation2 + $0x28] sm:$0xff]
    %v30 = vld [vmem:[#allocation2 + $0x30] sm:$0xff]
    %v31 = vld [vmem:[#allocation2 + $0x38] sm:$0xff]
    %v32 = vld [vmem:[#allocation2 + $0x40] sm:$0xff]
    %v33 = vld [vmem:[#allocation2 + $0x48] sm:$0xff]
    %v34 = vld [vmem:[#allocation2 + $0x50] sm:$0xff]
    %v35 = vld [vmem:[#allocation2 + $0x58] sm:$0xff]
    %v36 = vld [vmem:[#allocation2 + $0x60] sm:$0xff]
    %v37 = vld [vmem:[#allocation2 + $0x68] sm:$0xff]
    %v38 = vld [vmem:[#allocation2 + $0x70] sm:$0xff]
    %v39 = vld [vmem:[#allocation2 + $0x78] sm:$0xff]
    %vm40 = vcmask 156672
    %41 = vst.msk [vmem:[%s1] sm:$0x3] %vm40, 0.0
    %42 = vst.msk [vmem:[%s1 + $0x18] sm:$0x3] %vm40, 0.0
    %43 = vst.msk [vmem:[%s1 + $0x30] sm:$0x3] %vm40, 0.0
    %44 = vst.msk [vmem:[%s1 + $0x48] sm:$0x3] %vm40, 0.0
    %45 = vst.msk [vmem:[%s1 + $0x60] sm:$0x3] %vm40, 0.0
    %46 = vst.msk [vmem:[%s1 + $0x78] sm:$0x3] %vm40, 0.0
    %47 = vst.msk [vmem:[%s1 + $0x90] sm:$0x3] %vm40, 0.0
    %48 = vst.msk [vmem:[%s1 + $0xa8] sm:$0x3] %vm40, 0.0
    %49 = vst.msk [vmem:[%s1 + $0x12] sm:$0x3] %vm40, 0.0
    %50 = vst.msk [vmem:[%s1 + $0x2a] sm:$0x3] %vm40, 0.0
    %51 = vst.msk [vmem:[%s1 + $0x42] sm:$0x3] %vm40, 0.0
    %52 = vst.msk [vmem:[%s1 + $0x5a] sm:$0x3] %vm40, 0.0
    %53 = vst.msk [vmem:[%s1 + $0x72] sm:$0x3] %vm40, 0.0
    %54 = vst.msk [vmem:[%s1 + $0x8a] sm:$0x3] %vm40, 0.0
    %55 = vst.msk [vmem:[%s1 + $0xa2] sm:$0x3] %vm40, 0.0
    %56 = vst.msk [vmem:[%s1 + $0xba] sm:$0x3] %vm40, 0.0
    %73 = vrot.lane.b32.xlu0 %v24, 114
    %v74 = vpop.permute.xlu0 %73
    %75 = vrot.lane.b32.xlu0 %v25, 114
    %v76 = vpop.permute.xlu0 %75
    %77 = vrot.lane.b32.xlu0 %v26, 114
    %v78 = vpop.permute.xlu0 %77
    %79 = vrot.lane.b32.xlu0 %v27, 114
    %v80 = vpop.permute.xlu0 %79
    %81 = vrot.lane.b32.xlu0 %v28, 114
    %v82 = vpop.permute.xlu0 %81
    %83 = vrot.lane.b32.xlu0 %v29, 114
    %v84 = vpop.permute.xlu0 %83
    %85 = vrot.lane.b32.xlu0 %v30, 114
    %v86 = vpop.permute.xlu0 %85
    %87 = vrot.lane.b32.xlu0 %v31, 114
    %v88 = vpop.permute.xlu0 %87
    %89 = vrot.lane.b32.xlu0 %v32, 114
    %v90 = vpop.permute.xlu0 %89
    %91 = vrot.lane.b32.xlu0 %v33, 114
    %v92 = vpop.permute.xlu0 %91
    %93 = vrot.lane.b32.xlu0 %v34, 114
    %v94 = vpop.permute.xlu0 %93
    %95 = vrot.lane.b32.xlu0 %v35, 114
    %v96 = vpop.permute.xlu0 %95
    %97 = vrot.lane.b32.xlu0 %v36, 114
    %v98 = vpop.permute.xlu0 %97
    %99 = vrot.lane.b32.xlu0 %v37, 114
    %v100 = vpop.permute.xlu0 %99
    %101 = vrot.lane.b32.xlu0 %v38, 114
    %v102 = vpop.permute.xlu0 %101
    %103 = vrot.lane.b32.xlu0 %v39, 114
    %v104 = vpop.permute.xlu0 %103
    %121 = vrot.lane.b32.xlu0 %v24, 2
    %v122 = vpop.permute.xlu0 %121
    %123 = vrot.lane.b32.xlu0 %v25, 2
    %v124 = vpop.permute.xlu0 %123
    %125 = vrot.lane.b32.xlu0 %v26, 2
    %v126 = vpop.permute.xlu0 %125
    %127 = vrot.lane.b32.xlu0 %v27, 2
    %v128 = vpop.permute.xlu0 %127
    %129 = vrot.lane.b32.xlu0 %v28, 2
    %v130 = vpop.permute.xlu0 %129
    %131 = vrot.lane.b32.xlu0 %v29, 2
    %v132 = vpop.permute.xlu0 %131
    %133 = vrot.lane.b32.xlu0 %v30, 2
    %v134 = vpop.permute.xlu0 %133
    %135 = vrot.lane.b32.xlu0 %v31, 2
    %v136 = vpop.permute.xlu0 %135
    %137 = vrot.lane.b32.xlu0 %v32, 2
    %v138 = vpop.permute.xlu0 %137
    %139 = vrot.lane.b32.xlu0 %v33, 2
    %v140 = vpop.permute.xlu0 %139
    %141 = vrot.lane.b32.xlu0 %v34, 2
    %v142 = vpop.permute.xlu0 %141
    %143 = vrot.lane.b32.xlu0 %v35, 2
    %v144 = vpop.permute.xlu0 %143
    %145 = vrot.lane.b32.xlu0 %v36, 2
    %v146 = vpop.permute.xlu0 %145
    %147 = vrot.lane.b32.xlu0 %v37, 2
    %v148 = vpop.permute.xlu0 %147
    %149 = vrot.lane.b32.xlu0 %v38, 2
    %v150 = vpop.permute.xlu0 %149
    %151 = vrot.lane.b32.xlu0 %v39, 2
    %v152 = vpop.permute.xlu0 %151
    %169 = vrot.lane.b32.xlu0 %v24, 18
    %v170 = vpop.permute.xlu0 %169
    %171 = vrot.lane.b32.xlu0 %v25, 18
    %v172 = vpop.permute.xlu0 %171
    %173 = vrot.lane.b32.xlu0 %v26, 18
    %v174 = vpop.permute.xlu0 %173
    %175 = vrot.lane.b32.xlu0 %v27, 18
    %v176 = vpop.permute.xlu0 %175
    %177 = vrot.lane.b32.xlu0 %v28, 18
    %v178 = vpop.permute.xlu0 %177
    %179 = vrot.lane.b32.xlu0 %v29, 18
    %v180 = vpop.permute.xlu0 %179
    %181 = vrot.lane.b32.xlu0 %v30, 18
    %v182 = vpop.permute.xlu0 %181
    %183 = vrot.lane.b32.xlu0 %v31, 18
    %v184 = vpop.permute.xlu0 %183
    %185 = vrot.lane.b32.xlu0 %v32, 18
    %v186 = vpop.permute.xlu0 %185
    %187 = vrot.lane.b32.xlu0 %v33, 18
    %v188 = vpop.permute.xlu0 %187
    %189 = vrot.lane.b32.xlu0 %v34, 18
    %v190 = vpop.permute.xlu0 %189
    %191 = vrot.lane.b32.xlu0 %v35, 18
    %v192 = vpop.permute.xlu0 %191
    %193 = vrot.lane.b32.xlu0 %v36, 18
    %v194 = vpop.permute.xlu0 %193
    %195 = vrot.lane.b32.xlu0 %v37, 18
    %v196 = vpop.permute.xlu0 %195
    %197 = vrot.lane.b32.xlu0 %v38, 18
    %v198 = vpop.permute.xlu0 %197
    %199 = vrot.lane.b32.xlu0 %v39, 18
    %v200 = vpop.permute.xlu0 %199
    %vm217 = vcmask 15360
    %v218 = vsel %vm217, %v74, %v122
    %v219 = vsel %vm217, %v76, %v124
    %v220 = vsel %vm217, %v78, %v126
    %v221 = vsel %vm217, %v80, %v128
    %v222 = vsel %vm217, %v82, %v130
    %v223 = vsel %vm217, %v84, %v132
    %v224 = vsel %vm217, %v86, %v134
    %v225 = vsel %vm217, %v88, %v136
    %v226 = vsel %vm217, %v90, %v138
    %v227 = vsel %vm217, %v92, %v140
    %v228 = vsel %vm217, %v94, %v142
    %v229 = vsel %vm217, %v96, %v144
    %v230 = vsel %vm217, %v98, %v146
    %v231 = vsel %vm217, %v100, %v148
    %v232 = vsel %vm217, %v102, %v150
    %v233 = vsel %vm217, %v104, %v152
    %vm234 = vcmask 146432
    %v235 = vsel %vm234, %v218, %v170
    %v236 = vsel %vm234, %v219, %v172
    %v237 = vsel %vm234, %v220, %v174
    %v238 = vsel %vm234, %v221, %v176
    %v239 = vsel %vm234, %v222, %v178
    %v240 = vsel %vm234, %v223, %v180
    %v241 = vsel %vm234, %v224, %v182
    %v242 = vsel %vm234, %v225, %v184
    %v243 = vsel %vm234, %v226, %v186
    %v244 = vsel %vm234, %v227, %v188
    %v245 = vsel %vm234, %v228, %v190
    %v246 = vsel %vm234, %v229, %v192
    %v247 = vsel %vm234, %v230, %v194
    %v248 = vsel %vm234, %v231, %v196
    %v249 = vsel %vm234, %v232, %v198
    %v250 = vsel %vm234, %v233, %v200
    %vm251 = vcmask 162816
    %252 = vst.msk [vmem:[%s1 + $0x2] sm:$0xff] %vm251, %v235
    %253 = vst.msk [vmem:[%s1 + $0xa] sm:$0xff] %vm251, %v236
    %254 = vst.msk [vmem:[%s1 + $0x1a] sm:$0xff] %vm251, %v237
    %255 = vst.msk [vmem:[%s1 + $0x22] sm:$0xff] %vm251, %v238
    %256 = vst.msk [vmem:[%s1 + $0x32] sm:$0xff] %vm251, %v239
    %257 = vst.msk [vmem:[%s1 + $0x3a] sm:$0xff] %vm251, %v240
    %258 = vst.msk [vmem:[%s1 + $0x4a] sm:$0xff] %vm251, %v241
    %259 = vst.msk [vmem:[%s1 + $0x52] sm:$0xff] %vm251, %v242
    %260 = vst.msk [vmem:[%s1 + $0x62] sm:$0xff] %vm251, %v243
    %261 = vst.msk [vmem:[%s1 + $0x6a] sm:$0xff] %vm251, %v244
    %262 = vst.msk [vmem:[%s1 + $0x7a] sm:$0xff] %vm251, %v245
    %263 = vst.msk [vmem:[%s1 + $0x82] sm:$0xff] %vm251, %v246
    %264 = vst.msk [vmem:[%s1 + $0x92] sm:$0xff] %vm251, %v247
    %265 = vst.msk [vmem:[%s1 + $0x9a] sm:$0xff] %vm251, %v248
    %266 = vst.msk [vmem:[%s1 + $0xaa] sm:$0xff] %vm251, %v249
    %267 = vst.msk [vmem:[%s1 + $0xb2] sm:$0xff] %vm251, %v250
    // Predicated region
    $region10: #{tpu_custom_call.1} parent=1 // pred_check
      _
    $region11: #{tpu_custom_call.1} parent=1 // pred_check_branch
      %269 = sbr.rel (0) target = $region13
    $region12: #{tpu_custom_call.1} parent=1 // pred_region
      _
    $region13: #{tpu_custom_call.1} parent=1 // pred_fallthru
      _
    // Predicated region
    $region14: #{tpu_custom_call.1} parent=1 // pred_check
      _
    $region15: #{tpu_custom_call.1} parent=1 // pred_check_branch
      %271 = sbr.rel (0) target = $region17
    $region16: #{tpu_custom_call.1} parent=1 // pred_region
      _
    $region17: #{tpu_custom_call.1} parent=1 // pred_fallthru
      _
    %272 = vsyncpa [#allocation3], 1

</llo_original>
